<compile_context>
chip_gen: v7x
topology: tpu7x:2x2x1
jax: 0.10.0
libtpu: 0.0.40
codegen_flags: <defaults>
</compile_context>

<pallas_src>
import jax
import jax.numpy as jnp
from jax.experimental import pallas as pl
from jax.experimental.pallas import tpu as pltpu

_LANES = 128                      # vreg lane width
_TARGET_BLOCK_ROWS = 4096         # (4096, 128) f32 = 2 MiB per block
_PALLAS_MIN_BATCH = 256 * 1024    # below this, plain JAX is cheaper


def _critic_kernel(w_ref, b_ref, x_ref, o_ref):
    # w_ref, b_ref: scalar-prefetch (1,) refs in SMEM.
    # x_ref / o_ref: (block_rows, 128) VMEM tiles (lane-dense view of `action`).
    w = w_ref[0]
    b = b_ref[0]
    x = x_ref[...].astype(jnp.float32)       # in-kernel upcast (v5e: no bf16 VPU)
    o_ref[...] = (x * w + b).astype(o_ref.dtype)


def _sublane_multiple(dtype) -> int:
    """Native sublane granularity for the dtype (packing-aware)."""
    itemsize = jnp.dtype(dtype).itemsize
    if itemsize >= 4:
        return 8
    return 8 * (4 // itemsize)    # bf16/f16 -> 16, int8/fp8 -> 32


def _ceil_to(x: int, m: int) -> int:
    return ((x + m - 1) // m) * m


def critic_forward(action: jax.Array, weight: jax.Array, bias: jax.Array,
                   *, force_pallas: bool = False,
                   donate_action: bool = False) -> jax.Array:
    """Equivalent of Critic.forward(action): nn.Linear(1, 1)(action).

    action: (B, 1)
    weight: (1, 1)   (PyTorch nn.Linear weight, shape (out, in))
    bias:   (1,)
    donate_action: alias the (lane-dense view of the) input to the output
                   buffer; only use if the caller no longer needs `action`.
    """
    assert action.ndim == 2 and action.shape[-1] == 1
    B = action.shape[0]
    out_dtype = action.dtype

    w_s = weight.reshape((1,)).astype(jnp.float32)    # W[0, 0]
    b_s = bias.reshape((1,)).astype(jnp.float32)

    # Small/medium batches: a pallas_call is pure launch overhead and blocks
    # fusion with surrounding ops; the op only wins once HBM streaming time
    # exceeds tens of microseconds.
    if B < _PALLAS_MIN_BATCH and not force_pallas:
        y = action.astype(jnp.float32) * w_s[0] + b_s[0]
        return y.astype(out_dtype)

    # ---- lane-dense reshape: (B, 1) -> (rows, 128) ----------------------------
    # Pad only to one lane row (128); skip the pad entirely when already aligned
    # (avoids a full extra HBM read+write pass around the kernel).
    padded_B = _ceil_to(B, _LANES)
    flat = action.reshape((B,))
    if padded_B != B:
        flat = jnp.pad(flat, (0, padded_B - B))
    rows = padded_B // _LANES
    x2d = flat.reshape((rows, _LANES))                # native dtype, no wrapper cast

    # ---- block-rows selection --------------------------------------------------
    sub = _sublane_multiple(out_dtype)                # 8 / 16 / 32 by dtype
    if rows <= sub:
        # Single tiny block equal to the full array dims (always legal).
        block_rows = rows
    else:
        block_rows = min(_TARGET_BLOCK_ROWS, rows)
        block_rows = max(sub, (block_rows // sub) * sub)   # keep native tiling
        # Guarantee >= 2 grid steps so the "parallel" axis can shard across both
        # TensorCores on v7x (harmless ~0.35us extra step on v5e/v6e).
        if pl.cdiv(rows, block_rows) < 2 and rows >= 2 * sub:
            block_rows = max(sub, (rows // 2 // sub) * sub)

    grid = (pl.cdiv(rows, block_rows),)               # partial last block is masked

    grid_spec = pltpu.PrefetchScalarGridSpec(
        num_scalar_prefetch=2,                        # w_s, b_s -> SMEM
        grid=grid,
        in_specs=[
            pl.BlockSpec((block_rows, _LANES), lambda i, w, b: (i, 0)),
        ],
        out_specs=pl.BlockSpec((block_rows, _LANES), lambda i, w, b: (i, 0)),
    )

    call_kwargs = {}
    if donate_action:
        # Opt-in: saves the separate output HBM allocation / donation copy.
        call_kwargs["input_output_aliases"] = {2: 0}

    out2d = pl.pallas_call(
        _critic_kernel,
        out_shape=jax.ShapeDtypeStruct((rows, _LANES), out_dtype),
        grid_spec=grid_spec,
        compiler_params=pltpu.CompilerParams(
            dimension_semantics=("parallel",),        # shard blocks across v7x TCs
        ),
        **call_kwargs,
    )(w_s, b_s, x2d)

    if padded_B == B:
        return out2d.reshape((B, 1))                  # no extra slice pass
    return out2d.reshape((padded_B, 1))[:B]


def init_critic_params(key):
    """Deterministic init matching nn.Linear(1, 1): U(-1/sqrt(1), 1/sqrt(1))."""
    kw, kb = jax.random.split(key)
    weight = jax.random.uniform(kw, (1, 1), jnp.float32, minval=-1.0, maxval=1.0)
    bias = jax.random.uniform(kb, (1,), jnp.float32, minval=-1.0, maxval=1.0)
    return weight, bias


if __name__ == "__main__":
    key = jax.random.PRNGKey(0)
    k_params, k_a0, k_a1, k_a2 = jax.random.split(key, 4)

    weight, bias = init_critic_params(k_params)

    def ref_fn(a):
        return (a.astype(jnp.float32) @ weight.T + bias).astype(a.dtype)

    # 1) Tiny batch through the Pallas kernel (single full-array block, padding).
    action_small = jax.random.normal(k_a0, (8, 1), jnp.float32)
    out = jax.block_until_ready(critic_forward(action_small, weight, bias,
                                               force_pallas=True))
    assert out.shape == (8, 1)
    assert jnp.allclose(out, ref_fn(action_small), atol=1e-6, rtol=1e-6)

    # 2) Non-aligned batch: exercises padding, trailing slice, and a >=2-step
    #    grid (block_rows halved so both v7x TCs would engage).
    action_mid = jax.random.normal(k_a1, (2000, 1), jnp.float32)
    out = jax.block_until_ready(critic_forward(action_mid, weight, bias,
                                               force_pallas=True))
    assert out.shape == (2000, 1)
    assert jnp.allclose(out, ref_fn(action_mid), atol=1e-6, rtol=1e-6)

    # 3) bf16, lane-aligned batch: no pad / no slice path, 16-sublane-aligned
    #    blocks, >=2-step grid, in-kernel f32 upcast.
    action_bf16 = (jax.random.normal(k_a2, (4096, 1), jnp.float32)
                   .astype(jnp.bfloat16))
    out = jax.block_until_ready(critic_forward(action_bf16, weight, bias,
                                               force_pallas=True))
    assert out.dtype == jnp.bfloat16 and out.shape == (4096, 1)
    assert jnp.allclose(out.astype(jnp.float32),
                        ref_fn(action_bf16).astype(jnp.float32),
                        atol=1e-2, rtol=1e-2)

    # 4) Default small-batch fast path (pure JAX, no Pallas launch).
    out = jax.block_until_ready(critic_forward(action_small, weight, bias))
    assert jnp.allclose(out, ref_fn(action_small), atol=1e-6, rtol=1e-6)

    print("KERNEL_OK")
</pallas_src>

<mosaic_0001>
module attributes {stable_mosaic.version = 11 : i64} {
  func.func @_critic_kernel(%arg0: i32, %arg1: memref<1xf32, #tpu.memory_space<smem>>, %arg2: memref<1xf32, #tpu.memory_space<smem>>, %arg3: memref<1x128xf32, #tpu.memory_space<vmem>>, %arg4: memref<1x128xf32, #tpu.memory_space<vmem>>) attributes {dimension_semantics = [#tpu.dimension_semantics<parallel>], iteration_bounds = array<i64: 1>, scalar_prefetch = 2 : i64, scratch_operands = 0 : i64, tpu.core_type = #tpu.core_type<tc>, window_params = [{transform_indices = @transform_0, window_bounds = array<i64: 1, 128>}, {transform_indices = @transform_1, window_bounds = array<i64: 1, 128>}]} {
    %c0 = arith.constant 0 : index
    %0 = memref.load %arg1[%c0] : memref<1xf32, #tpu.memory_space<smem>>
    %c0_0 = arith.constant 0 : index
    %1 = memref.load %arg2[%c0_0] : memref<1xf32, #tpu.memory_space<smem>>
    %c0_1 = arith.constant 0 : index
    %c0_2 = arith.constant 0 : index
    %2 = vector.load %arg3[%c0_1, %c0_2] : memref<1x128xf32, #tpu.memory_space<vmem>>, vector<1x128xf32>
    %3 = vector.broadcast %0 : f32 to vector<1x128xf32>
    %4 = arith.mulf %2, %3 : vector<1x128xf32>
    %5 = vector.broadcast %1 : f32 to vector<1x128xf32>
    %6 = arith.addf %4, %5 : vector<1x128xf32>
    %c0_3 = arith.constant 0 : index
    %c0_4 = arith.constant 0 : index
    %7 = vector.load %arg4[%c0_3, %c0_4] : memref<1x128xf32, #tpu.memory_space<vmem>>, vector<1x128xf32>
    tpu.vector_store %arg4[%c0_3, %c0_4], %6 {strides = array<i32>} : memref<1x128xf32, #tpu.memory_space<vmem>>, vector<1x128xf32>,
    return
  }
  func.func @transform_0(%arg0: i32, %arg1: memref<1xf32, #tpu.memory_space<smem>>, %arg2: memref<1xf32, #tpu.memory_space<smem>>) -> (i32, i32) {
    %c0_i32 = arith.constant 0 : i32
    %c0_i32_0 = arith.constant 0 : i32
    return %arg0, %c0_i32 : i32, i32
  }
  func.func @transform_1(%arg0: i32, %arg1: memref<1xf32, #tpu.memory_space<smem>>, %arg2: memref<1xf32, #tpu.memory_space<smem>>) -> (i32, i32) {
    %c0_i32 = arith.constant 0 : i32
    %c0_i32_0 = arith.constant 0 : i32
    return %arg0, %c0_i32 : i32, i32
  }
}

</mosaic_0001>

<llo_original>
// kernel: tpu_custom_call.1
$region0: #{tpu_custom_call.1}
  #allocation0 [shape = 'u32[]', space=smem, size = 0x4, offset = 0x4, fixed_abs, tag = 'smem constant byte address 0x4 - core index']
  #allocation1 [shape = 'u32[144,128]{1,0:T(1,128)}', space=vmem, size = 0x12000, scoped, tag = 'internal scratch']
  #allocation2 [shape = 's32[1]{0}', space=sflag, size = 0x4, scoped, tag = 'scoped memory for tpu_custom_call.1']
  #allocation3 [shape = 'f32[1]{0:T(128)S(6)}', space=smem, size = 0x200, scoped, tag = 'prefetched SMEM operand 0']
  #allocation4 [shape = 'f32[1]{0:T(128)S(6)}', space=smem, size = 0x200, scoped, tag = 'prefetched SMEM operand 1']
  %s0 = inlined_call_operand.<no memory space> [shape: f32[1], index: 0, kind: input, shape index: {}]
  %s1 = inlined_call_operand.<no memory space> [shape: f32[1], index: 1, kind: input, shape index: {}]
  %s2 = inlined_call_operand.vmem [shape: f32[1,128], index: 2, kind: input, shape index: {}]
  %s3 = inlined_call_operand.hbm [shape: f32[1,128], index: 3, kind: output, shape index: {}]
  %s4 = sld [smem:[#allocation0]]
  $region14: #{tpu_custom_call.1} parent=0
    _
  %s6 = ssub.s32 1, %s4
  %s7 = scalar_select 0, %s6, %s4
  %8 = sst [smem:[#allocation3]] %s0
  %9 = sst [smem:[#allocation4]] %s1
  $region1: #{tpu_custom_call.1} parent=0
    #allocation5 [shape = 'u8[512]{0}', space=vmem, size = 0x400, scoped, tag = 'output window, operand 0, single buffered']
    #allocation6 [shape = 's32[1]{0}', space=sflag, size = 0x4, scoped, tag = 'scoped memory for tpu_custom_call.1']
    %10 = vsyncpa [#allocation6], 0
    // Predicated region
    $region2: #{tpu_custom_call.1} parent=1 // pred_check
      _
    $region3: #{tpu_custom_call.1} parent=1 // pred_check_branch
      %12 = sbr.rel (0) target = $region5
    $region4: #{tpu_custom_call.1} parent=1 // pred_region
      _
    $region5: #{tpu_custom_call.1} parent=1 // pred_fallthru
      _
    %s13 = sld [smem:[#allocation3]]
    %s14 = sld [smem:[#allocation4]]
    %v15 = vld [vmem:[%s2] sm:$0x1]
    %v16 = vstv %s13
    %v17 = vmul.f32 %v15, %v16
    %v18 = vstv %s14
    %v19 = vadd.f32 %v17, %v18
    %20 = vst [vmem:[#allocation5] sm:$0x1] %v19
    // Predicated region
    $region6: #{tpu_custom_call.1} parent=1 // pred_check
      _
    $region7: #{tpu_custom_call.1} parent=1 // pred_check_branch
      %22 = sbr.rel (0) target = $region9
    $region8: #{tpu_custom_call.1} parent=1 // pred_region
      %s24 = ssub.s32 16, 16
      %25 = vsyncadd [#allocation6], %s24
      %s27 = sshll.u32 [#allocation5], 4
      %s28 = int_to_ptr.vmem [resolvable:$true] %s27
      %30 = dma.vmem_to_hbm [thread:$0]  %s28, 16, %s3, [#allocation6]
    $region9: #{tpu_custom_call.1} parent=1 // pred_fallthru
      _
    // Predicated region
    $region10: #{tpu_custom_call.1} parent=1 // pred_check
      _
    $region11: #{tpu_custom_call.1} parent=1 // pred_check_branch
      %32 = sbr.rel (0) target = $region13
    $region12: #{tpu_custom_call.1} parent=1 // pred_region
      %33 = dma.done [#allocation6], 16
    $region13: #{tpu_custom_call.1} parent=1 // pred_fallthru
      _
    %34 = vsyncpa [#allocation6], 1

</llo_original>
